<compile_context>
chip_gen: v7x
topology: tpu7x:2x2x1
jax: 0.10.0
libtpu: 0.0.40
codegen_flags: <defaults>
</compile_context>

<pallas_src>
import functools
import math

import jax
import jax.numpy as jnp
from jax.experimental import pallas as pl
from jax.experimental.pallas import tpu as pltpu


def attention_kernel(ref_ref, q_ref, mask_ref, w1t_ref, w2t_ref, v_ref,
                     probs_ref, qa_ref, *, C, inv_T):
    # ref_ref : (TB, L, H)    q_ref : (TB, H)    mask_ref : (TB, L)  (1.0 = masked)
    # w1t_ref : (H, H) = W1^T    w2t_ref : (H, H) = W2^T    v_ref : (1, H)
    # probs_ref : (TB, L)        qa_ref : (TB, H)
    TB, L, H = ref_ref.shape

    ref = ref_ref[...]                                                  # (TB, L, H)
    w1t = w1t_ref[...]                                                  # (H, H)

    # q @ W2^T fused in-kernel: one (TB, H) @ (H, H) MXU matmul.
    q_w2 = jnp.dot(q_ref[...], w2t_ref[...],
                   preferred_element_type=jnp.float32)                  # (TB, H)

    # 1x1 Conv1d == per-position linear: one tall (TB*L, H) @ (H, H) MXU matmul.
    ref_w1 = jnp.dot(ref.reshape(TB * L, H), w1t,
                     preferred_element_type=jnp.float32).reshape(TB, L, H)

    s = jnp.tanh(ref_w1 + q_w2[:, None, :])                             # (TB, L, H)

    # u_i = V(tanh(...)): VPU multiply + lane reduce over H; result lands lane-dense.
    u = jnp.sum(s * v_ref[...], axis=-1)                                # (TB, L)

    # masked_fill(-inf) then C*tanh(u/T): tanh(-inf) = -1, so masked logits are exactly -C.
    t = C * jnp.tanh(u * inv_T)
    u = jnp.where(mask_ref[...] > 0.5, -C, t)                           # (TB, L)

    # Softmax over the sequence (lane) axis; divide goes to the EUP via pl.reciprocal.
    m = jnp.max(u, axis=-1, keepdims=True)
    e = jnp.exp(u - m)
    p = e * pl.reciprocal(jnp.sum(e, axis=-1, keepdims=True), approx=False)   # (TB, L)

    probs_ref[...] = p

    # q_a = probs @ ref_W1 = (probs @ ref) @ W1^T  (linearity): sublane reduce over L
    # (L is small), then a single (TB, H) @ (H, H) MXU matmul — no M=1 batched matmuls.
    ctx = jnp.sum(p[:, :, None] * ref, axis=1)                          # (TB, H)
    qa_ref[...] = jnp.dot(ctx, w1t, preferred_element_type=jnp.float32)  # (TB, H)


def _pick_num_blocks(B, L, H, per_block_budget=8 << 20):
    """Choose the number of batch blocks (TB = B // n_blocks, always exact — no padding).

    Preference order:
      * 2 blocks when the batch splits into sublane-aligned halves (TB % 8 == 0) and each
        half fits the VMEM budget — lets dimension_semantics=("parallel",) use both
        TensorCores on v7x (cost on 1-TC v5e/v6e is one extra ~0.35 us grid step).
      * otherwise 1 block (no per-step overhead) when the whole batch fits.
      * otherwise the smallest exact divisor giving a sublane-aligned tile that fits.
    """
    # f32 bytes streamed per batch row: ref + q + mask + probs + qa.
    row_bytes = (L * H + H + L + L + H) * 4

    def fits(nb):
        tb = B // nb
        # double-buffered tiles + same-order f32 intermediates (ref_w1, s) headroom
        return tb * row_bytes * 2 + tb * (2 * L * H) * 4 <= per_block_budget

    if B % 2 == 0 and (B // 2) % 8 == 0 and fits(2):
        return 2
    if fits(1):
        return 1
    for nb in range(2, B + 1):
        if B % nb == 0 and ((B // nb) % 8 == 0 or nb == B) and fits(nb):
            return nb
    return B


def attention_forward(ref, q, mask, w1, w2, v, *, C=10.0, T=1.0, num_blocks=None):
    """ref: (B, L, H) f32, q: (B, H) f32, mask: (B, L) bool.
    w1: (H, H) Conv1d weight (out,in) with kernel dim squeezed, w2: (H, H) Linear (out,in),
    v: (1, H) Linear (out=1, in)."""
    B, L, H = ref.shape
    n_blocks = num_blocks if num_blocks is not None else _pick_num_blocks(B, L, H)
    assert B % n_blocks == 0
    TB = B // n_blocks

    mask_f = mask.astype(jnp.float32)                 # (B, L), lane-dense
    w1t = jnp.transpose(w1)                           # (H_in, H_out)
    w2t = jnp.transpose(w2)
    v2 = v.reshape(1, H)

    # Explicit VMEM limit: enough for the chosen tile, clamped to be safe on
    # v5e (16 MiB default scoped) .. v7x (64 MiB physical).
    tile_bytes = TB * (L * H + H + L + L + H) * 4
    weight_bytes = (2 * H * H + H) * 4
    vmem_est = 2 * tile_bytes + 2 * weight_bytes + TB * (2 * L * H) * 4 + (2 << 20)
    vmem_limit = int(min(max(vmem_est, 16 << 20), 32 << 20))

    probs, qa = pl.pallas_call(
        functools.partial(attention_kernel, C=float(C), inv_T=float(1.0 / T)),
        out_shape=(
            jax.ShapeDtypeStruct((B, L), jnp.float32),
            jax.ShapeDtypeStruct((B, H), jnp.float32),
        ),
        grid_spec=pltpu.PrefetchScalarGridSpec(
            num_scalar_prefetch=0,
            grid=(n_blocks,),
            in_specs=[
                pl.BlockSpec((TB, L, H), lambda b: (b, 0, 0)),   # ref (batch tile)
                pl.BlockSpec((TB, H), lambda b: (b, 0)),         # q (batch tile)
                pl.BlockSpec((TB, L), lambda b: (b, 0)),         # mask (lane-dense)
                pl.BlockSpec((H, H), lambda b: (0, 0)),          # W1^T (resident)
                pl.BlockSpec((H, H), lambda b: (0, 0)),          # W2^T (resident)
                pl.BlockSpec((1, H), lambda b: (0, 0)),          # V
            ],
            out_specs=[
                pl.BlockSpec((TB, L), lambda b: (b, 0)),         # probs (lane-dense)
                pl.BlockSpec((TB, H), lambda b: (b, 0)),         # q_a
            ],
        ),
        compiler_params=pltpu.CompilerParams(
            dimension_semantics=("parallel",),
            vmem_limit_bytes=vmem_limit,
        ),
    )(ref, q, mask_f, w1t, w2t, v2)

    return probs, qa


def attention_reference(ref, q, mask, w1, w2, v, *, C=10.0, T=1.0):
    ref_w1 = jnp.einsum('blh,oh->blo', ref, w1)
    q_w2 = jnp.einsum('bh,oh->bo', q, w2)[:, None, :]
    u = jnp.einsum('blh,h->bl', jnp.tanh(ref_w1 + q_w2), v.reshape(-1))
    u = jnp.where(mask, -jnp.inf, u)
    u = C * jnp.tanh(u / T)
    p = jax.nn.softmax(u, axis=1)
    qa = jnp.einsum('bl,blh->bh', p, ref_w1)
    return p, qa


def _run_case(key, B, L, H, C=10.0, T=1.0):
    k_ref, k_q, k_m, k_w1, k_w2, k_v = jax.random.split(key, 6)
    ref = jax.random.normal(k_ref, (B, L, H), dtype=jnp.float32)
    q = jax.random.normal(k_q, (B, H), dtype=jnp.float32)
    mask = jax.random.bernoulli(k_m, p=0.25, shape=(B, L))

    bound = 1.0 / math.sqrt(H)
    w1 = jax.random.uniform(k_w1, (H, H), jnp.float32, -bound, bound)  # Conv1d (out,in,1) squeezed
    w2 = jax.random.uniform(k_w2, (H, H), jnp.float32, -bound, bound)  # Linear (out,in)
    v = jax.random.uniform(k_v, (1, H), jnp.float32, -bound, bound)    # Linear (1,in)

    probs, q_a = attention_forward(ref, q, mask, w1, w2, v, C=C, T=T)
    jax.block_until_ready((probs, q_a))

    probs_ref, qa_ref = attention_reference(ref, q, mask, w1, w2, v, C=C, T=T)
    assert probs.shape == (B, L) and q_a.shape == (B, H)
    assert jnp.allclose(probs, probs_ref, rtol=1e-4, atol=1e-5), "probs mismatch"
    assert jnp.allclose(q_a, qa_ref, rtol=1e-4, atol=1e-4), "q_a mismatch"


if __name__ == "__main__":
    key = jax.random.PRNGKey(0)
    k0, k1, k2 = jax.random.split(key, 3)

    # Small shapes consistent with the module (batch=2, seq=8, hidden=32): grid=1, no padding.
    _run_case(k0, B=2, L=8, H=32)
    # Larger batch (not 16-divisible): still a single grid step, TB=B, no padding.
    _run_case(k1, B=100, L=16, H=32)
    # 16-divisible batch: exercises the 2-block (v7x dual-TensorCore-friendly) path.
    _run_case(k2, B=128, L=16, H=32)

    # TODO(synk): the Encoder LSTM stacks, graph-embedding bmm chain, and the Decoder's
    # sequential categorical sampling loop of ActorCriticNetwork have no clean single-kernel
    # Pallas equivalent here; only the Pointer-Net Attention forward is implemented as a
    # Pallas kernel.
    print("KERNEL_OK")
</pallas_src>

<mosaic_0001>
module attributes {stable_mosaic.version = 11 : i64} {
  func.func @attention_kernel(%arg0: i32, %arg1: memref<2x8x32xf32, #tpu.memory_space<vmem>>, %arg2: memref<2x32xf32, #tpu.memory_space<vmem>>, %arg3: memref<2x8xf32, #tpu.memory_space<vmem>>, %arg4: memref<32x32xf32, #tpu.memory_space<vmem>>, %arg5: memref<32x32xf32, #tpu.memory_space<vmem>>, %arg6: memref<1x32xf32, #tpu.memory_space<vmem>>, %arg7: memref<2x8xf32, #tpu.memory_space<vmem>>, %arg8: memref<2x32xf32, #tpu.memory_space<vmem>>) attributes {dimension_semantics = [#tpu.dimension_semantics<parallel>], iteration_bounds = array<i64: 1>, scalar_prefetch = 0 : i64, scratch_operands = 0 : i64, tpu.core_type = #tpu.core_type<tc>, window_params = [{transform_indices = @transform_0, window_bounds = array<i64: 2, 8, 32>}, {transform_indices = @transform_1, window_bounds = array<i64: 2, 32>}, {transform_indices = @transform_2, window_bounds = array<i64: 2, 8>}, {pipeline_mode = #tpu.pipeline_mode<synchronous>, transform_indices = @transform_3, window_bounds = array<i64: 32, 32>}, {pipeline_mode = #tpu.pipeline_mode<synchronous>, transform_indices = @transform_4, window_bounds = array<i64: 32, 32>}, {pipeline_mode = #tpu.pipeline_mode<synchronous>, transform_indices = @transform_5, window_bounds = array<i64: 1, 32>}, {transform_indices = @transform_6, window_bounds = array<i64: 2, 8>}, {transform_indices = @transform_7, window_bounds = array<i64: 2, 32>}]} {
    %c0 = arith.constant 0 : index
    %c0_0 = arith.constant 0 : index
    %c0_1 = arith.constant 0 : index
    %0 = vector.load %arg1[%c0, %c0_0, %c0_1] : memref<2x8x32xf32, #tpu.memory_space<vmem>>, vector<2x8x32xf32>
    %c0_2 = arith.constant 0 : index
    %c0_3 = arith.constant 0 : index
    %1 = vector.load %arg4[%c0_2, %c0_3] : memref<32x32xf32, #tpu.memory_space<vmem>>, vector<32x32xf32>
    %c0_4 = arith.constant 0 : index
    %c0_5 = arith.constant 0 : index
    %2 = vector.load %arg2[%c0_4, %c0_5] : memref<2x32xf32, #tpu.memory_space<vmem>>, vector<2x32xf32>
    %c0_6 = arith.constant 0 : index
    %c0_7 = arith.constant 0 : index
    %3 = vector.load %arg5[%c0_6, %c0_7] : memref<32x32xf32, #tpu.memory_space<vmem>>, vector<32x32xf32>
    %cst = arith.constant dense<0.000000e+00> : vector<2x32xf32>
    %4 = tpu.matmul %2, %3, %cst {dimension_numbers = #tpu.dot_dimension_numbers<[1], [0], [0], [1], [0, 0, 1, 1], [], []>} : vector<2x32xf32>, vector<32x32xf32>, vector<2x32xf32> -> vector<2x32xf32>
    %5 = vector.shape_cast %0 : vector<2x8x32xf32> to vector<16x32xf32>
    %cst_8 = arith.constant dense<0.000000e+00> : vector<16x32xf32>
    %6 = tpu.matmul %5, %1, %cst_8 {dimension_numbers = #tpu.dot_dimension_numbers<[1], [0], [0], [1], [0, 0, 1, 1], [], []>} : vector<16x32xf32>, vector<32x32xf32>, vector<16x32xf32> -> vector<16x32xf32>
    %7 = vector.shape_cast %6 : vector<16x32xf32> to vector<2x8x32xf32>
    %8 = vector.shape_cast %4 : vector<2x32xf32> to vector<2x1x32xf32>
    %9 = vector.broadcast %8 : vector<2x1x32xf32> to vector<2x8x32xf32>
    %10 = arith.addf %7, %9 : vector<2x8x32xf32>
    %11 = math.tanh %10 : vector<2x8x32xf32>
    %c0_9 = arith.constant 0 : index
    %c0_10 = arith.constant 0 : index
    %12 = vector.load %arg6[%c0_9, %c0_10] : memref<1x32xf32, #tpu.memory_space<vmem>>, vector<1x32xf32>
    %13 = vector.shape_cast %12 : vector<1x32xf32> to vector<1x1x32xf32>
    %14 = vector.broadcast %13 : vector<1x1x32xf32> to vector<2x8x32xf32>
    %15 = arith.mulf %11, %14 : vector<2x8x32xf32>
    %cst_11 = arith.constant dense<0.000000e+00> : vector<2x8xf32>
    %16 = vector.multi_reduction <add>, %15, %cst_11 [2] : vector<2x8x32xf32> to vector<2x8xf32>
    %cst_12 = arith.constant 1.000000e+00 : f32
    %17 = vector.broadcast %cst_12 : f32 to vector<2x8xf32>
    %18 = arith.mulf %16, %17 : vector<2x8xf32>
    %19 = math.tanh %18 : vector<2x8xf32>
    %cst_13 = arith.constant 1.000000e+01 : f32
    %20 = vector.broadcast %cst_13 : f32 to vector<2x8xf32>
    %21 = arith.mulf %20, %19 : vector<2x8xf32>
    %c0_14 = arith.constant 0 : index
    %c0_15 = arith.constant 0 : index
    %22 = vector.load %arg3[%c0_14, %c0_15] : memref<2x8xf32, #tpu.memory_space<vmem>>, vector<2x8xf32>
    %cst_16 = arith.constant 5.000000e-01 : f32
    %23 = vector.broadcast %cst_16 : f32 to vector<2x8xf32>
    %24 = arith.cmpf ogt, %22, %23 : vector<2x8xf32>
    %cst_17 = arith.constant -1.000000e+01 : f32
    %25 = vector.broadcast %cst_17 : f32 to vector<2x8xf32>
    %26 = arith.select %24, %25, %21 : vector<2x8xi1>, vector<2x8xf32>
    %cst_18 = arith.constant dense<0xFF800000> : vector<2xf32>
    %27 = vector.multi_reduction <maximumf>, %26, %cst_18 [1] : vector<2x8xf32> to vector<2xf32>
    %28 = vector.shape_cast %27 : vector<2xf32> to vector<2x1xf32>
    %29 = vector.broadcast %28 : vector<2x1xf32> to vector<2x8xf32>
    %30 = arith.subf %26, %29 : vector<2x8xf32>
    %31 = math.exp %30 : vector<2x8xf32>
    %cst_19 = arith.constant dense<0.000000e+00> : vector<2xf32>
    %32 = vector.multi_reduction <add>, %31, %cst_19 [1] : vector<2x8xf32> to vector<2xf32>
    %33 = vector.shape_cast %32 : vector<2xf32> to vector<2x1xf32>
    %34 = tpu.reciprocal %33 : vector<2x1xf32> -> vector<2x1xf32>
    %35 = vector.broadcast %34 : vector<2x1xf32> to vector<2x8xf32>
    %36 = arith.mulf %31, %35 : vector<2x8xf32>
    %c0_20 = arith.constant 0 : index
    %c0_21 = arith.constant 0 : index
    %37 = vector.load %arg7[%c0_20, %c0_21] : memref<2x8xf32, #tpu.memory_space<vmem>>, vector<2x8xf32>
    tpu.vector_store %arg7[%c0_20, %c0_21], %36 {strides = array<i32>} : memref<2x8xf32, #tpu.memory_space<vmem>>, vector<2x8xf32>,
    %38 = vector.shape_cast %36 : vector<2x8xf32> to vector<2x8x1xf32>
    %39 = vector.broadcast %38 : vector<2x8x1xf32> to vector<2x8x32xf32>
    %40 = arith.mulf %39, %0 : vector<2x8x32xf32>
    %cst_22 = arith.constant dense<0.000000e+00> : vector<2x32xf32>
    %41 = vector.multi_reduction <add>, %40, %cst_22 [1] : vector<2x8x32xf32> to vector<2x32xf32>
    %cst_23 = arith.constant dense<0.000000e+00> : vector<2x32xf32>
    %42 = tpu.matmul %41, %1, %cst_23 {dimension_numbers = #tpu.dot_dimension_numbers<[1], [0], [0], [1], [0, 0, 1, 1], [], []>} : vector<2x32xf32>, vector<32x32xf32>, vector<2x32xf32> -> vector<2x32xf32>
    %c0_24 = arith.constant 0 : index
    %c0_25 = arith.constant 0 : index
    %43 = vector.load %arg8[%c0_24, %c0_25] : memref<2x32xf32, #tpu.memory_space<vmem>>, vector<2x32xf32>
    tpu.vector_store %arg8[%c0_24, %c0_25], %42 {strides = array<i32>} : memref<2x32xf32, #tpu.memory_space<vmem>>, vector<2x32xf32>,
    return
  }
  func.func @transform_0(%arg0: i32) -> (i32, i32, i32) {
    %c0_i32 = arith.constant 0 : i32
    %c0_i32_0 = arith.constant 0 : i32
    %c0_i32_1 = arith.constant 0 : i32
    return %arg0, %c0_i32, %c0_i32_0 : i32, i32, i32
  }
  func.func @transform_1(%arg0: i32) -> (i32, i32) {
    %c0_i32 = arith.constant 0 : i32
    %c0_i32_0 = arith.constant 0 : i32
    return %arg0, %c0_i32 : i32, i32
  }
  func.func @transform_2(%arg0: i32) -> (i32, i32) {
    %c0_i32 = arith.constant 0 : i32
    %c0_i32_0 = arith.constant 0 : i32
    return %arg0, %c0_i32 : i32, i32
  }
  func.func @transform_3(%arg0: i32) -> (i32, i32) {
    %c0_i32 = arith.constant 0 : i32
    %c0_i32_0 = arith.constant 0 : i32
    %c0_i32_1 = arith.constant 0 : i32
    return %c0_i32, %c0_i32_0 : i32, i32
  }
  func.func @transform_4(%arg0: i32) -> (i32, i32) {
    %c0_i32 = arith.constant 0 : i32
    %c0_i32_0 = arith.constant 0 : i32
    %c0_i32_1 = arith.constant 0 : i32
    return %c0_i32, %c0_i32_0 : i32, i32
  }
  func.func @transform_5(%arg0: i32) -> (i32, i32) {
    %c0_i32 = arith.constant 0 : i32
    %c0_i32_0 = arith.constant 0 : i32
    %c0_i32_1 = arith.constant 0 : i32
    return %c0_i32, %c0_i32_0 : i32, i32
  }
  func.func @transform_6(%arg0: i32) -> (i32, i32) {
    %c0_i32 = arith.constant 0 : i32
    %c0_i32_0 = arith.constant 0 : i32
    return %arg0, %c0_i32 : i32, i32
  }
  func.func @transform_7(%arg0: i32) -> (i32, i32) {
    %c0_i32 = arith.constant 0 : i32
    %c0_i32_0 = arith.constant 0 : i32
    return %arg0, %c0_i32 : i32, i32
  }
}

</mosaic_0001>

<llo_original>
// kernel: tpu_custom_call.1
$region0: #{tpu_custom_call.1}
  #allocation0 [shape = 'u32[]', space=smem, size = 0x4, offset = 0x4, fixed_abs, tag = 'smem constant byte address 0x4 - core index']
  #allocation1 [shape = 'u32[144,128]{1,0:T(1,128)}', space=vmem, size = 0x12000, scoped, tag = 'internal scratch']
  %s0 = inlined_call_operand.hbm [shape: f32[2,8,32], index: 0, kind: input, shape index: {}]
  %s1 = inlined_call_operand.vmem [shape: f32[2,32], index: 1, kind: input, shape index: {}]
  %s2 = inlined_call_operand.vmem [shape: f32[2,8], index: 2, kind: input, shape index: {}]
  %s3 = inlined_call_operand.hbm [shape: f32[32,32], index: 3, kind: input, shape index: {}]
  %s4 = inlined_call_operand.hbm [shape: f32[32,32], index: 4, kind: input, shape index: {}]
  %s5 = inlined_call_operand.vmem [shape: f32[1,32], index: 5, kind: input, shape index: {}]
  %s6 = inlined_call_operand.hbm [shape: f32[2,8], index: 6, kind: output, shape index: {0}]
  %s7 = inlined_call_operand.hbm [shape: f32[2,32], index: 7, kind: output, shape index: {1}]
  %8 = xla_tuple %s6, %s7
  %s9 = sld [smem:[#allocation0]]
  $region54: #{tpu_custom_call.1} parent=0
    _
  %s11 = ssub.s32 1, %s9
  %s12 = scalar_select 0, %s11, %s9
  $region1: #{tpu_custom_call.1} parent=0
    #allocation2 [shape = 'u8[8192]{0}', space=vmem, size = 0x2000, scoped, tag = 'input window, operand 0, single buffered']
    #allocation3 [shape = 's32[1]{0}', space=sflag, size = 0x4, scoped, tag = 'scoped memory for tpu_custom_call.1']
    #allocation4 [shape = 's32[1]{0}', space=sflag, size = 0x4, scoped, tag = 'scoped memory for tpu_custom_call.1']
    #allocation5 [shape = 'u8[16384]{0}', space=vmem, size = 0x4000, scoped, tag = 'input window, operand 3, single buffered']
    #allocation6 [shape = 's32[1]{0}', space=sflag, size = 0x4, scoped, tag = 'scoped memory for tpu_custom_call.1']
    #allocation7 [shape = 'u8[16384]{0}', space=vmem, size = 0x4000, scoped, tag = 'input window, operand 4, single buffered']
    #allocation8 [shape = 'u8[1024]{0}', space=vmem, size = 0x400, scoped, tag = 'output window, operand 0, single buffered']
    #allocation9 [shape = 'u8[1024]{0}', space=vmem, size = 0x400, scoped, tag = 'output window, operand 1, single buffered']
    #allocation10 [shape = 's32[1]{0}', space=sflag, size = 0x4, scoped, tag = 'scoped memory for tpu_custom_call.1']
    %13 = vsyncpa [#allocation3], 0
    %14 = vsyncpa [#allocation6], 0
    %15 = vsyncpa [#allocation4], 0
    %16 = vsyncpa [#allocation10], 0
    // Predicated region
    $region2: #{tpu_custom_call.1} parent=1 // pred_check
      _
    $region3: #{tpu_custom_call.1} parent=1 // pred_check_branch
      %18 = sbr.rel (0) target = $region5
    $region4: #{tpu_custom_call.1} parent=1 // pred_region
      %s20 = ssub.s32 256, 256
      %21 = vsyncadd [#allocation3], %s20
      %s22 = sshll.u32 [#allocation2], 4
      %s23 = int_to_ptr.vmem [resolvable:$true] %s22
      %28 = dma.hbm_to_vmem [thread:$0]  %s0, 256, %s23, [#allocation3], 128, 128, 8
    $region5: #{tpu_custom_call.1} parent=1 // pred_fallthru
      _
    // Predicated region
    $region6: #{tpu_custom_call.1} parent=1 // pred_check
      _
    $region7: #{tpu_custom_call.1} parent=1 // pred_check_branch
      %30 = sbr.rel (0) target = $region9
    $region8: #{tpu_custom_call.1} parent=1 // pred_region
      _
    $region9: #{tpu_custom_call.1} parent=1 // pred_fallthru
      _
    // Predicated region
    $region10: #{tpu_custom_call.1} parent=1 // pred_check
      _
    $region11: #{tpu_custom_call.1} parent=1 // pred_check_branch
      %32 = sbr.rel (0) target = $region13
    $region12: #{tpu_custom_call.1} parent=1 // pred_region
      _
    $region13: #{tpu_custom_call.1} parent=1 // pred_fallthru
      _
    // Predicated region
    $region14: #{tpu_custom_call.1} parent=1 // pred_check
      _
    $region15: #{tpu_custom_call.1} parent=1 // pred_check_branch
      %34 = sbr.rel (0) target = $region17
    $region16: #{tpu_custom_call.1} parent=1 // pred_region
      %s36 = ssub.s32 512, 512
      %37 = vsyncadd [#allocation6], %s36
      %s38 = sshll.u32 [#allocation5], 4
      %s39 = int_to_ptr.vmem [resolvable:$true] %s38
      %44 = dma.hbm_to_vmem [thread:$0]  %s3, 512, %s39, [#allocation6], 128, 128, 8
    $region17: #{tpu_custom_call.1} parent=1 // pred_fallthru
      _
    // Predicated region
    $region18: #{tpu_custom_call.1} parent=1 // pred_check
      _
    $region19: #{tpu_custom_call.1} parent=1 // pred_check_branch
      %46 = sbr.rel (0) target = $region21
    $region20: #{tpu_custom_call.1} parent=1 // pred_region
      %s48 = ssub.s32 512, 512
      %49 = vsyncadd [#allocation6], %s48
      %s50 = sshll.u32 [#allocation7], 4
      %s51 = int_to_ptr.vmem [resolvable:$true] %s50
      %56 = dma.hbm_to_vmem [thread:$0]  %s4, 512, %s51, [#allocation6], 128, 128, 8
    $region21: #{tpu_custom_call.1} parent=1 // pred_fallthru
      _
    // Predicated region
    $region22: #{tpu_custom_call.1} parent=1 // pred_check
      _
    $region23: #{tpu_custom_call.1} parent=1 // pred_check_branch
      %58 = sbr.rel (0) target = $region25
    $region24: #{tpu_custom_call.1} parent=1 // pred_region
      _
    $region25: #{tpu_custom_call.1} parent=1 // pred_fallthru
      _
    // Predicated region
    $region26: #{tpu_custom_call.1} parent=1 // pred_check
      _
    $region27: #{tpu_custom_call.1} parent=1 // pred_check_branch
      %60 = sbr.rel (0) target = $region29
    $region28: #{tpu_custom_call.1} parent=1 // pred_region
      %61 = dma.done [#allocation3], 256
    $region29: #{tpu_custom_call.1} parent=1 // pred_fallthru
      _
    // Predicated region
    $region30: #{tpu_custom_call.1} parent=1 // pred_check
      _
    $region31: #{tpu_custom_call.1} parent=1 // pred_check_branch
      %63 = sbr.rel (0) target = $region33
    $region32: #{tpu_custom_call.1} parent=1 // pred_region
      %64 = dma.done [#allocation6], 512
    $region33: #{tpu_custom_call.1} parent=1 // pred_fallthru
      _
    // Predicated region
    $region34: #{tpu_custom_call.1} parent=1 // pred_check
      _
    $region35: #{tpu_custom_call.1} parent=1 // pred_check_branch
      %66 = sbr.rel (0) target = $region37
    $region36: #{tpu_custom_call.1} parent=1 // pred_region
      %67 = dma.done [#allocation6], 512
    $region37: #{tpu_custom_call.1} parent=1 // pred_fallthru
      _
    %v68 = vld [vmem:[#allocation2] sm:$0xff]
    %v69 = vld [vmem:[#allocation2 + $0x8] sm:$0xff]
    %v70 = vld [vmem:[#allocation5] sm:$0xff]
    %v71 = vld [vmem:[#allocation5 + $0x8] sm:$0xff]
    %v72 = vld [vmem:[#allocation5 + $0x10] sm:$0xff]
    %v73 = vld [vmem:[#allocation5 + $0x18] sm:$0xff]
    %v74 = vld [vmem:[%s1] sm:$0x3]
    %v75 = vld [vmem:[#allocation7] sm:$0xff]
    %v76 = vld [vmem:[#allocation7 + $0x8] sm:$0xff]
    %v77 = vld [vmem:[#allocation7 + $0x10] sm:$0xff]
    %v78 = vld [vmem:[#allocation7 + $0x18] sm:$0xff]
    %vm79 = vcmask 261120
    %v81 = vsel %vm79, %v74, 0
    %83 = vmatprep.subr.mxu0 0.0
    %84 = vmatpush1.msra.mxu0 %v75
    %85 = vmatprep.subr.mxu0 0.0
    %86 = vmatpush1.msra.mxu0 %v76
    %87 = vmatprep.subr.mxu0 0.0
    %88 = vmatpush1.msra.mxu0 %v77
    %89 = vmatprep.subr.mxu0 0.0
    %90 = vmatpush1.msra.mxu0 %v78
    %91 = vmatprep.subr.mxu0 0.0
    %92 = vmatpush1.msra.mxu0 0.0
    %93 = vmatprep.subr.mxu0 0.0
    %94 = vmatpush1.msra.mxu0 0.0
    %95 = vmatprep.subr.mxu0 0.0
    %96 = vmatpush1.msra.mxu0 0.0
    %97 = vmatprep.subr.mxu0 0.0
    %98 = vmatpush1.msra.mxu0 0.0
    %99 = vmatprep.subr.mxu0 0.0
    %100 = vmatpush1.msra.mxu0 0.0
    %101 = vmatprep.subr.mxu0 0.0
    %102 = vmatpush1.msra.mxu0 0.0
    %103 = vmatprep.subr.mxu0 0.0
    %104 = vmatpush1.msra.mxu0 0.0
    %105 = vmatprep.subr.mxu0 0.0
    %106 = vmatpush1.msra.mxu0 0.0
    %107 = vmatprep.subr.mxu0 0.0
    %108 = vmatpush1.msra.mxu0 0.0
    %109 = vmatprep.subr.mxu0 0.0
    %110 = vmatpush1.msra.mxu0 0.0
    %111 = vmatprep.subr.mxu0 0.0
    %112 = vmatpush1.msra.mxu0 0.0
    %113 = vmatprep.subr.mxu0 0.0
    %114 = vmatpush1.msra.mxu0 0.0
    %115 = vmatprep.subr.mxu0 0.0
    %116 = vmatpush1.msra.mxu0 0.0
    %117 = vmatprep.subr.mxu0 0.0
    %118 = vmatpush1.msra.mxu0 0.0
    %119 = vmatprep.subr.mxu0 0.0
    %120 = vmatpush1.msra.mxu0 0.0
    %121 = vmatprep.subr.mxu0 0.0
    %122 = vmatpush1.msra.mxu0 0.0
    %123 = vmatprep.subr.mxu0 0.0
    %124 = vmatpush1.msra.mxu0 0.0
    %125 = vmatprep.subr.mxu0 0.0
    %126 = vmatpush1.msra.mxu0 0.0
    %127 = vmatprep.subr.mxu0 0.0
    %128 = vmatpush1.msra.mxu0 0.0
    %129 = vmatprep.subr.mxu0 0.0
    %130 = vmatpush1.msra.mxu0 0.0
    %131 = vmatprep.subr.mxu0 0.0
    %132 = vmatpush1.msra.mxu0 0.0
    %133 = vmatprep.subr.mxu0 0.0
    %134 = vmatpush1.msra.mxu0 0.0
    %135 = vmatprep.subr.mxu0 0.0
    %136 = vmatpush1.msra.mxu0 0.0
    %137 = vmatprep.subr.mxu0 0.0
    %138 = vmatpush1.msra.mxu0 0.0
    %139 = vmatprep.subr.mxu0 0.0
    %140 = vmatpush1.msra.mxu0 0.0
    %141 = vmatprep.subr.mxu0 0.0
    %142 = vmatpush1.msra.mxu0 0.0
    %143 = vmatprep.subr.mxu0 0.0
    %144 = vmatpush1.msra.mxu0 0.0
    %145 = vmatprep.subr.mxu0 0.0
    %146 = vmatpush1.msra.mxu0 0.0
    %147 = vmatprep.mubr.f32.mxu0 0.0
    %148 = vmatmul.mubr.f32.gmra.mrb[0].mxu0 %v81
    %v149 = vpop.f32.mrb[0].mxu0
    %v150 = vadd.f32 0.0, %v149
    %v151 = vpop.f32.mrb[0].mxu0
    %152 = vdwg.mxu0
    %v154 = vsel %vm79, %v68, 0
    %v157 = vsel %vm79, %v69, 0
    %159 = vmatprep.subr.mxu0 0.0
    %160 = vmatpush1.msra.mxu0 %v70
    %161 = vmatprep.subr.mxu0 0.0
    %162 = vmatpush1.msra.mxu0 %v71
    %163 = vmatprep.subr.mxu0 0.0
    %164 = vmatpush1.msra.mxu0 %v72
    %165 = vmatprep.subr.mxu0 0.0
    %166 = vmatpush1.msra.mxu0 %v73
    %167 = vmatprep.subr.mxu0 0.0
    %168 = vmatpush1.msra.mxu0 0.0
    %169 = vmatprep.subr.mxu0 0.0
    %170 = vmatpush1.msra.mxu0 0.0
    %171 = vmatprep.subr.mxu0 0.0
    %172 = vmatpush1.msra.mxu0 0.0
    %173 = vmatprep.subr.mxu0 0.0
    %174 = vmatpush1.msra.mxu0 0.0
    %175 = vmatprep.subr.mxu0 0.0
    %176 = vmatpush1.msra.mxu0 0.0
    %177 = vmatprep.subr.mxu0 0.0
    %178 = vmatpush1.msra.mxu0 0.0
    %179 = vmatprep.subr.mxu0 0.0
    %180 = vmatpush1.msra.mxu0 0.0
    %181 = vmatprep.subr.mxu0 0.0
    %182 = vmatpush1.msra.mxu0 0.0
    %183 = vmatprep.subr.mxu0 0.0
    %184 = vmatpush1.msra.mxu0 0.0
    %185 = vmatprep.subr.mxu0 0.0
    %186 = vmatpush1.msra.mxu0 0.0
    %187 = vmatprep.subr.mxu0 0.0
    %188 = vmatpush1.msra.mxu0 0.0
    %189 = vmatprep.subr.mxu0 0.0
    %190 = vmatpush1.msra.mxu0 0.0
    %191 = vmatprep.subr.mxu0 0.0
    %192 = vmatpush1.msra.mxu0 0.0
    %193 = vmatprep.subr.mxu0 0.0
    %194 = vmatpush1.msra.mxu0 0.0
    %195 = vmatprep.subr.mxu0 0.0
    %196 = vmatpush1.msra.mxu0 0.0
    %197 = vmatprep.subr.mxu0 0.0
    %198 = vmatpush1.msra.mxu0 0.0
    %199 = vmatprep.subr.mxu0 0.0
    %200 = vmatpush1.msra.mxu0 0.0
    %201 = vmatprep.subr.mxu0 0.0
    %202 = vmatpush1.msra.mxu0 0.0
    %203 = vmatprep.subr.mxu0 0.0
    %204 = vmatpush1.msra.mxu0 0.0
    %205 = vmatprep.subr.mxu0 0.0
    %206 = vmatpush1.msra.mxu0 0.0
    %207 = vmatprep.subr.mxu0 0.0
    %208 = vmatpush1.msra.mxu0 0.0
    %209 = vmatprep.subr.mxu0 0.0
    %210 = vmatpush1.msra.mxu0 0.0
    %211 = vmatprep.subr.mxu0 0.0
    %212 = vmatpush1.msra.mxu0 0.0
    %213 = vmatprep.subr.mxu0 0.0
    %214 = vmatpush1.msra.mxu0 0.0
    %215 = vmatprep.subr.mxu0 0.0
    %216 = vmatpush1.msra.mxu0 0.0
    %217 = vmatprep.subr.mxu0 0.0
    %218 = vmatpush1.msra.mxu0 0.0
    %219 = vmatprep.subr.mxu0 0.0
    %220 = vmatpush1.msra.mxu0 0.0
    %221 = vmatprep.subr.mxu0 0.0
    %222 = vmatpush1.msra.mxu0 0.0
    %223 = vmatprep.mubr.f32.mxu0 0.0
    %224 = vmatmul.mubr.f32.gmra.mrb[0].mxu0 %v154
    %v225 = vpop.f32.mrb[0].mxu0
    %v226 = vadd.f32 0.0, %v225
    %v227 = vpop.f32.mrb[0].mxu0
    %228 = vmatprep.mubr.f32.mxu0 0.0
    %229 = vmatmul.mubr.f32.gmra.mrb[0].mxu0 %v157
    %v230 = vpop.f32.mrb[0].mxu0
    %v231 = vadd.f32 0.0, %v230
    %v232 = vpop.f32.mrb[0].mxu0
    %233 = vdwg.mxu0
    %v236 = vunpack.c.l.s4 1966171168
    %v237 = vunpack.c.0.s8 %v236
    %v238 = vlaneseq
    %v239 = vshrl.u32 %v238, 7
    %v240 = vsub.s32 %v237, %v239
    %v241 = vrot.slane %v150, %v240
    %v242 = vcombine.high %v241, %v241
    %v244 = vunpack.c.l.s4 1966171168
    %v245 = vunpack.c.0.s8 %v244
    %v246 = vlaneseq
    %v247 = vshrl.u32 %v246, 7
    %v248 = vsub.s32 %v245, %v247
    %v249 = vrot.slane %v241, %v248
    %v251 = vunpack.c.l.s4 1966171168
    %v252 = vunpack.c.0.s8 %v251
    %v253 = vlaneseq
    %v254 = vshrl.u32 %v253, 7
    %v255 = vsub.s32 %v252, %v254
    %v256 = vrot.slane %v242, %v255
    %v257 = vlaneseq
    %v258 = vshrl.u32 %v257, 7
    %v259 = vsub.s32 0, %v258
    %v260 = vrot.slane %v249, %v259
    %v261 = vlaneseq
    %v262 = vshrl.u32 %v261, 7
    %v263 = vsub.s32 0, %v262
    %v264 = vrot.slane %v256, %v263
    %v267 = vadd.f32 %v226, %v260
    %v268 = vadd.f32 %v231, %v264
    %v269 = vtanh.pop %v267
    %v270 = vtanh.pop %v268
    %v271 = vld [vmem:[%s5] sm:$0x1]
    %v273 = vlaneseq
    %v274 = vshrl.u32 %v273, 7
    %v275 = vsub.s32 0, %v274
    %v276 = vrot.slane %v271, %v275
    %v278 = vmul.f32 %v269, %v276
    %v279 = vmul.f32 %v270, %v276
    %v280 = vsel %vm79, %v278, 0.0
    %281 = vadd.xlane.f32.xlu0 %v280
    %v282 = vpop.xlane.xlu0 %281
    %v283 = vsel %vm79, %v279, 0.0
    %284 = vadd.xlane.f32.xlu0 %v283
    %v285 = vpop.xlane.xlu0 %284
    %v286 = vtanh.pop %v282
    %v287 = vtanh.pop %v285
    %v288 = vmul.f32 %v286, 10.0
    %v289 = vmul.f32 %v287, 10.0
    %v290 = vld [vmem:[%s2] sm:$0x3]
    %vm291 = vcmp.gt.f32.partialorder %v290, 0.5
    %v294 = vlaneseq
    %v295 = vand.u32 %v294, 127
    %v296 = vlaneseq
    %v297 = vshrl.u32 %v296, 7
    %v298 = vsub.s32 %v295, %v297
    %v299 = vrot.slane %v288, %v298
    %v300 = vlaneseq
    %v301 = vshrl.u32 %v300, 7
    %v302 = vsub.s32 %v295, %v301
    %v303 = vrot.slane %v289, %v302
    %vm304 = vcmask 1041409
    %v305 = vsel %vm304, %v303, %v299
    %v307 = vsel %vm291, -10.0, %v305
    %vm308 = vcmask 58368
    %v309 = vsel %vm308, %v307, -inf
    %310 = vmax.xlane.f32.xlu0 %v309
    %v311 = vpop.xlane.xlu0 %310
    %v312 = vsub.f32 %v307, %v311
    %v313 = vmul.f32 %v312, 1.442695
    %v314 = vpow.pop %v313
    %v315 = vsel %vm308, %v314, 0.0
    %316 = vadd.xlane.f32.xlu0 %v315
    %v317 = vpop.xlane.xlu0 %316
    %v318 = vrcp.pop %v317
    %v319 = vmul.f32 %v314, %v318
    %320 = vst.msk [vmem:[#allocation8] sm:$0x3] %vm308, %v319
    %v321 = vlaneseq
    %v322 = vshrl.u32 %v321, 7
    %v323 = vsub.s32 0, %v322
    %v324 = vrot.slane %v319, %v323
    %326 = vbcast.lane.b32.xlu0 %v324, 256
    %v327 = vpop.permute.xlu0 %326
    %v328 = vlaneseq
    %v329 = vshrl.u32 %v328, 7
    %v330 = vsub.s32 1, %v329
    %v331 = vrot.slane %v319, %v330
    %333 = vbcast.lane.b32.xlu0 %v331, 256
    %v334 = vpop.permute.xlu0 %333
    %v335 = vmul.f32 %v327, %v68
    %v336 = vmul.f32 %v334, %v69
    %v337 = vsel %vm79, %v335, 0.0
    %v338 = vrot.slane %v337, 4
    %v339 = vadd.f32 %v337, %v338
    %v340 = vrot.slane %v339, 2
    %v341 = vadd.f32 %v339, %v340
    %v342 = vrot.slane %v341, 1
    %v343 = vadd.f32 %v341, %v342
    %v344 = vsel %vm79, %v336, 0.0
    %v345 = vrot.slane %v344, 4
    %v346 = vadd.f32 %v344, %v345
    %v347 = vrot.slane %v346, 2
    %v348 = vadd.f32 %v346, %v347
    %v349 = vrot.slane %v348, 1
    %v350 = vadd.f32 %v348, %v349
    %v353 = vsel %vm304, %v350, %v343
    %v354 = vsel %vm79, %v353, 0
    %356 = vmatprep.subr.mxu0 0.0
    %357 = vmatpush1.msra.mxu0 %v70
    %358 = vmatprep.subr.mxu0 0.0
    %359 = vmatpush1.msra.mxu0 %v71
    %360 = vmatprep.subr.mxu0 0.0
    %361 = vmatpush1.msra.mxu0 %v72
    %362 = vmatprep.subr.mxu0 0.0
    %363 = vmatpush1.msra.mxu0 %v73
    %364 = vmatprep.subr.mxu0 0.0
    %365 = vmatpush1.msra.mxu0 0.0
    %366 = vmatprep.subr.mxu0 0.0
    %367 = vmatpush1.msra.mxu0 0.0
    %368 = vmatprep.subr.mxu0 0.0
    %369 = vmatpush1.msra.mxu0 0.0
    %370 = vmatprep.subr.mxu0 0.0
    %371 = vmatpush1.msra.mxu0 0.0
    %372 = vmatprep.subr.mxu0 0.0
    %373 = vmatpush1.msra.mxu0 0.0
    %374 = vmatprep.subr.mxu0 0.0
    %375 = vmatpush1.msra.mxu0 0.0
    %376 = vmatprep.subr.mxu0 0.0
    %377 = vmatpush1.msra.mxu0 0.0
    %378 = vmatprep.subr.mxu0 0.0
    %379 = vmatpush1.msra.mxu0 0.0
    %380 = vmatprep.subr.mxu0 0.0
    %381 = vmatpush1.msra.mxu0 0.0
    %382 = vmatprep.subr.mxu0 0.0
    %383 = vmatpush1.msra.mxu0 0.0
    %384 = vmatprep.subr.mxu0 0.0
    %385 = vmatpush1.msra.mxu0 0.0
    %386 = vmatprep.subr.mxu0 0.0
    %387 = vmatpush1.msra.mxu0 0.0
    %388 = vmatprep.subr.mxu0 0.0
    %389 = vmatpush1.msra.mxu0 0.0
    %390 = vmatprep.subr.mxu0 0.0
    %391 = vmatpush1.msra.mxu0 0.0
    %392 = vmatprep.subr.mxu0 0.0
    %393 = vmatpush1.msra.mxu0 0.0
    %394 = vmatprep.subr.mxu0 0.0
    %395 = vmatpush1.msra.mxu0 0.0
    %396 = vmatprep.subr.mxu0 0.0
    %397 = vmatpush1.msra.mxu0 0.0
    %398 = vmatprep.subr.mxu0 0.0
    %399 = vmatpush1.msra.mxu0 0.0
    %400 = vmatprep.subr.mxu0 0.0
    %401 = vmatpush1.msra.mxu0 0.0
    %402 = vmatprep.subr.mxu0 0.0
    %403 = vmatpush1.msra.mxu0 0.0
    %404 = vmatprep.subr.mxu0 0.0
    %405 = vmatpush1.msra.mxu0 0.0
    %406 = vmatprep.subr.mxu0 0.0
    %407 = vmatpush1.msra.mxu0 0.0
    %408 = vmatprep.subr.mxu0 0.0
    %409 = vmatpush1.msra.mxu0 0.0
    %410 = vmatprep.subr.mxu0 0.0
    %411 = vmatpush1.msra.mxu0 0.0
    %412 = vmatprep.subr.mxu0 0.0
    %413 = vmatpush1.msra.mxu0 0.0
    %414 = vmatprep.subr.mxu0 0.0
    %415 = vmatpush1.msra.mxu0 0.0
    %416 = vmatprep.subr.mxu0 0.0
    %417 = vmatpush1.msra.mxu0 0.0
    %418 = vmatprep.subr.mxu0 0.0
    %419 = vmatpush1.msra.mxu0 0.0
    %420 = vmatprep.mubr.f32.mxu0 0.0
    %421 = vmatmul.mubr.f32.gmra.mrb[0].mxu0 %v354
    %v422 = vpop.f32.mrb[0].mxu0
    %v423 = vadd.f32 0.0, %v422
    %v424 = vpop.f32.mrb[0].mxu0
    %425 = vdwg.mxu0
    %vm426 = vcmask 254976
    %427 = vst.msk [vmem:[#allocation9] sm:$0x3] %vm426, %v423
    // Predicated region
    $region38: #{tpu_custom_call.1} parent=1 // pred_check
      _
    $region39: #{tpu_custom_call.1} parent=1 // pred_check_branch
      %429 = sbr.rel (0) target = $region41
    $region40: #{tpu_custom_call.1} parent=1 // pred_region
      %s431 = ssub.s32 32, 32
      %432 = vsyncadd [#allocation4], %s431
      %s434 = sshll.u32 [#allocation8], 4
      %s435 = int_to_ptr.vmem [resolvable:$true] %s434
      %437 = dma.vmem_to_hbm [thread:$0]  %s435, 32, %s6, [#allocation4]
    $region41: #{tpu_custom_call.1} parent=1 // pred_fallthru
      _
    // Predicated region
    $region42: #{tpu_custom_call.1} parent=1 // pred_check
      _
    $region43: #{tpu_custom_call.1} parent=1 // pred_check_branch
      %439 = sbr.rel (0) target = $region45
    $region44: #{tpu_custom_call.1} parent=1 // pred_region
      %s441 = ssub.s32 32, 32
      %442 = vsyncadd [#allocation10], %s441
      %s444 = sshll.u32 [#allocation9], 4
      %s445 = int_to_ptr.vmem [resolvable:$true] %s444
      %447 = dma.vmem_to_hbm [thread:$0]  %s445, 32, %s7, [#allocation10]
    $region45: #{tpu_custom_call.1} parent=1 // pred_fallthru
      _
    // Predicated region
    $region46: #{tpu_custom_call.1} parent=1 // pred_check
      _
    $region47: #{tpu_custom_call.1} parent=1 // pred_check_branch
      %449 = sbr.rel (0) target = $region49
    $region48: #{tpu_custom_call.1} parent=1 // pred_region
      %450 = dma.done [#allocation4], 32
    $region49: #{tpu_custom_call.1} parent=1 // pred_fallthru
      _
    // Predicated region
    $region50: #{tpu_custom_call.1} parent=1 // pred_check
      _
    $region51: #{tpu_custom_call.1} parent=1 // pred_check_branch
      %452 = sbr.rel (0) target = $region53
    $region52: #{tpu_custom_call.1} parent=1 // pred_region
      %453 = dma.done [#allocation10], 32
    $region53: #{tpu_custom_call.1} parent=1 // pred_fallthru
      _
    %454 = vsyncpa [#allocation3], 1
    %455 = vsyncpa [#allocation6], 1
    %456 = vsyncpa [#allocation4], 1
    %457 = vsyncpa [#allocation10], 1

</llo_original>
